<compile_context>
chip_gen: v7x
topology: tpu7x:2x2x1
jax: 0.10.0
libtpu: 0.0.40
codegen_flags: <defaults>
</compile_context>

<pallas_src>
import math
import jax
import jax.numpy as jnp
from jax.experimental import pallas as pl
from jax.experimental.pallas import tpu as pltpu

NUM_HEADS = 1  # module default (embed_dim=32, num_heads=1)


def _encoder_block_kernel(x_ref, mask_ref, wqkv_ref, b_ref, wo_ref, o_ref):
    B, S = mask_ref.shape            # static at trace time
    E = wo_ref.shape[0]
    hd = E // NUM_HEADS
    scale = 1.0 / math.sqrt(hd)

    x2d = x_ref[...]                                                    # (B*S, E)

    # Fused QKV projection: single MXU matmul + packed bias.
    qkv = jnp.dot(x2d, wqkv_ref[...], preferred_element_type=jnp.float32)
    qkv = qkv + b_ref[:, : 3 * E]                                       # (B*S, 3E)

    qkv3 = qkv.reshape(B, S, 3 * E)                                     # leading-dim split: free
    q = qkv3[:, :, 0 * E: 1 * E]                                        # (B, S, E)
    k = qkv3[:, :, 1 * E: 2 * E]
    v = qkv3[:, :, 2 * E: 3 * E]

    # Additive key-padding mask (True/1 == ignore that key position).
    add_mask = jnp.where(mask_ref[...] != 0, -1e9, 0.0).astype(jnp.float32)  # (B, S)

    # Scores: batched Q.K contracting the feature dim of both (no explicit K transpose).
    s = jax.lax.dot_general(q, k, (((2,), (2,)), ((0,), (0,))),
                            preferred_element_type=jnp.float32) * scale      # (B, S, S)
    s = s + add_mask[:, None, :]                                              # broadcast over queries

    # Numerically-stable softmax over keys.
    s_max = jnp.max(s, axis=-1, keepdims=True)
    e = jnp.exp(s - s_max)
    denom = jnp.sum(e, axis=-1, keepdims=True)
    p = e * pl.reciprocal(denom, approx=True)                                 # EUP vrcp
    # TODO(synk): attention-weight dropout (training mode) not implemented; eval semantics only.

    # Attention output: batched P.V.
    attn = jax.lax.dot_general(p, v, (((2,), (1,)), ((0,), (0,))),
                               preferred_element_type=jnp.float32)            # (B, S, E)
    attn2d = attn.reshape(B * S, E)

    # Output projection (+ packed output bias) and single dense store.
    out = (jnp.dot(attn2d, wo_ref[...], preferred_element_type=jnp.float32)
           + b_ref[:, 3 * E:])
    o_ref[...] = out.astype(o_ref.dtype)


def transformers_encoder_block(x, key_padding_mask, params):
    """x: (B, S, E) float32; key_padding_mask: (B, S) bool (True == pad/ignore)."""
    B, S, E = x.shape
    x2d = x.reshape(B * S, E)
    mask_i32 = key_padding_mask.astype(jnp.int32)

    # Pack weights/biases once in the wrapper (host-side, outside the kernel).
    wqkv = jnp.concatenate([params["wq"], params["wk"], params["wv"]], axis=1)   # (E, 3E)
    b_packed = jnp.concatenate(
        [params["bq"], params["bk"], params["bv"], params["bo"]], axis=1)        # (1, 4E)
    wo = params["wo"]

    vmem = pl.BlockSpec(memory_space=pltpu.MemorySpace.VMEM)
    out2d = pl.pallas_call(
        _encoder_block_kernel,
        out_shape=jax.ShapeDtypeStruct((B * S, E), x.dtype),
        in_specs=[vmem, vmem, vmem, vmem, vmem],
        out_specs=vmem,
        # No grid: single invocation (best on single-TC v5e/v6e; on v7x a grid=(B,)
        # "parallel" variant could use both TensorCores — only worth it at larger B*S*E).
    )(x2d, mask_i32, wqkv, b_packed, wo)
    return out2d.reshape(B, S, E)


def _reference(x, key_padding_mask, params):
    """Pure-JAX reference (same math as nn.MultiheadAttention, eval mode, 1 head)."""
    E = x.shape[-1]
    hd = E // NUM_HEADS
    scale = 1.0 / math.sqrt(hd)
    q = x @ params["wq"] + params["bq"]
    k = x @ params["wk"] + params["bk"]
    v = x @ params["wv"] + params["bv"]
    s = jnp.einsum("bqe,bke->bqk", q, k) * scale
    s = s + jnp.where(key_padding_mask, -1e9, 0.0)[:, None, :]
    p = jax.nn.softmax(s, axis=-1)
    attn = jnp.einsum("bqk,bke->bqe", p, v)
    return attn @ params["wo"] + params["bo"]


def _init_params(key, E):
    ks = jax.random.split(key, 4)
    scale = 1.0 / math.sqrt(E)
    return {
        "wq": jax.random.uniform(ks[0], (E, E), jnp.float32, -scale, scale),
        "wk": jax.random.uniform(ks[1], (E, E), jnp.float32, -scale, scale),
        "wv": jax.random.uniform(ks[2], (E, E), jnp.float32, -scale, scale),
        "bq": jnp.zeros((1, E), jnp.float32),
        "bk": jnp.zeros((1, E), jnp.float32),
        "bv": jnp.zeros((1, E), jnp.float32),
        "wo": jax.random.uniform(ks[3], (E, E), jnp.float32, -scale, scale),
        "bo": jnp.zeros((1, E), jnp.float32),
    }


if __name__ == "__main__":
    B, S, E = 2, 8, 32
    key = jax.random.PRNGKey(0)
    kx, kp = jax.random.split(key)
    x = jax.random.normal(kx, (B, S, E), jnp.float32)
    # key_padding_mask: True == ignore that key position (last 2 tokens of batch 1 padded).
    key_padding_mask = jnp.zeros((B, S), dtype=bool).at[1, -2:].set(True)

    params = _init_params(kp, E)

    out = transformers_encoder_block(x, key_padding_mask, params)
    out = jax.block_until_ready(out)

    ref = _reference(x, key_padding_mask, params)
    assert out.shape == (B, S, E)
    # Slightly relaxed tolerance: softmax denominator uses the EUP approx reciprocal.
    assert jnp.allclose(out, ref, rtol=2e-3, atol=2e-3), "mismatch vs reference"
    print("KERNEL_OK")
</pallas_src>

<mosaic_0001>
module attributes {stable_mosaic.version = 11 : i64} {
  func.func @_encoder_block_kernel(%arg0: memref<16x32xf32, #tpu.memory_space<vmem>>, %arg1: memref<2x8xi32, #tpu.memory_space<vmem>>, %arg2: memref<32x96xf32, #tpu.memory_space<vmem>>, %arg3: memref<1x128xf32, #tpu.memory_space<vmem>>, %arg4: memref<32x32xf32, #tpu.memory_space<vmem>>, %arg5: memref<16x32xf32, #tpu.memory_space<vmem>>) attributes {dimension_semantics = [], scalar_prefetch = 0 : i64, scratch_operands = 0 : i64, tpu.core_type = #tpu.core_type<tc>} {
    %c0 = arith.constant 0 : index
    %c0_0 = arith.constant 0 : index
    %0 = vector.load %arg0[%c0, %c0_0] : memref<16x32xf32, #tpu.memory_space<vmem>>, vector<16x32xf32>
    %c0_1 = arith.constant 0 : index
    %c0_2 = arith.constant 0 : index
    %1 = vector.load %arg2[%c0_1, %c0_2] : memref<32x96xf32, #tpu.memory_space<vmem>>, vector<32x96xf32>
    %cst = arith.constant dense<0.000000e+00> : vector<16x96xf32>
    %2 = tpu.matmul %0, %1, %cst {dimension_numbers = #tpu.dot_dimension_numbers<[1], [0], [0], [1], [0, 0, 1, 1], [], []>} : vector<16x32xf32>, vector<32x96xf32>, vector<16x96xf32> -> vector<16x96xf32>
    %c0_3 = arith.constant 0 : index
    %c0_4 = arith.constant 0 : index
    %3 = vector.load %arg3[%c0_3, %c0_4] : memref<1x128xf32, #tpu.memory_space<vmem>>, vector<1x96xf32>
    %4 = vector.broadcast %3 : vector<1x96xf32> to vector<16x96xf32>
    %5 = arith.addf %2, %4 : vector<16x96xf32>
    %6 = vector.shape_cast %5 : vector<16x96xf32> to vector<2x8x96xf32>
    %7 = vector.extract_strided_slice %6 {offsets = [0, 0, 0], sizes = [2, 8, 32], strides = [1, 1, 1]} : vector<2x8x96xf32> to vector<2x8x32xf32>
    %8 = vector.extract_strided_slice %6 {offsets = [0, 0, 32], sizes = [2, 8, 32], strides = [1, 1, 1]} : vector<2x8x96xf32> to vector<2x8x32xf32>
    %9 = vector.extract_strided_slice %6 {offsets = [0, 0, 64], sizes = [2, 8, 32], strides = [1, 1, 1]} : vector<2x8x96xf32> to vector<2x8x32xf32>
    %c0_5 = arith.constant 0 : index
    %c0_6 = arith.constant 0 : index
    %10 = vector.load %arg1[%c0_5, %c0_6] : memref<2x8xi32, #tpu.memory_space<vmem>>, vector<2x8xi32>
    %c0_i32 = arith.constant 0 : i32
    %11 = vector.broadcast %c0_i32 : i32 to vector<2x8xi32>
    %12 = arith.cmpi ne, %10, %11 : vector<2x8xi32>
    %cst_7 = arith.constant -1.000000e+09 : f32
    %cst_8 = arith.constant 0.000000e+00 : f32
    %13 = vector.broadcast %cst_7 : f32 to vector<2x8xf32>
    %14 = vector.broadcast %cst_8 : f32 to vector<2x8xf32>
    %15 = arith.select %12, %13, %14 : vector<2x8xi1>, vector<2x8xf32>
    %cst_9 = arith.constant dense<0.000000e+00> : vector<2x8x8xf32>
    %16 = tpu.matmul %7, %8, %cst_9 {dimension_numbers = #tpu.dot_dimension_numbers<[2], [2], [1], [1], [0, 0, 0, 1, 1, 1], [0], [0]>} : vector<2x8x32xf32>, vector<2x8x32xf32>, vector<2x8x8xf32> -> vector<2x8x8xf32>
    %cst_10 = arith.constant 0.176776692 : f32
    %17 = vector.broadcast %cst_10 : f32 to vector<2x8x8xf32>
    %18 = arith.mulf %16, %17 : vector<2x8x8xf32>
    %19 = vector.shape_cast %15 : vector<2x8xf32> to vector<2x1x8xf32>
    %20 = vector.broadcast %19 : vector<2x1x8xf32> to vector<2x8x8xf32>
    %21 = arith.addf %18, %20 : vector<2x8x8xf32>
    %cst_11 = arith.constant dense<0xFF800000> : vector<2x8xf32>
    %22 = vector.multi_reduction <maximumf>, %21, %cst_11 [2] : vector<2x8x8xf32> to vector<2x8xf32>
    %23 = vector.shape_cast %22 : vector<2x8xf32> to vector<2x8x1xf32>
    %24 = vector.broadcast %23 : vector<2x8x1xf32> to vector<2x8x8xf32>
    %25 = arith.subf %21, %24 : vector<2x8x8xf32>
    %26 = math.exp %25 : vector<2x8x8xf32>
    %cst_12 = arith.constant dense<0.000000e+00> : vector<2x8xf32>
    %27 = vector.multi_reduction <add>, %26, %cst_12 [2] : vector<2x8x8xf32> to vector<2x8xf32>
    %28 = vector.shape_cast %27 : vector<2x8xf32> to vector<2x8x1xf32>
    %29 = tpu.reciprocal %28 {approx = true} : vector<2x8x1xf32> -> vector<2x8x1xf32>
    %30 = vector.broadcast %29 : vector<2x8x1xf32> to vector<2x8x8xf32>
    %31 = arith.mulf %26, %30 : vector<2x8x8xf32>
    %cst_13 = arith.constant dense<0.000000e+00> : vector<2x8x32xf32>
    %32 = tpu.matmul %31, %9, %cst_13 {dimension_numbers = #tpu.dot_dimension_numbers<[2], [1], [1], [2], [0, 0, 0, 1, 1, 2], [0], [0]>} : vector<2x8x8xf32>, vector<2x8x32xf32>, vector<2x8x32xf32> -> vector<2x8x32xf32>
    %33 = vector.shape_cast %32 : vector<2x8x32xf32> to vector<16x32xf32>
    %c0_14 = arith.constant 0 : index
    %c0_15 = arith.constant 0 : index
    %34 = vector.load %arg4[%c0_14, %c0_15] : memref<32x32xf32, #tpu.memory_space<vmem>>, vector<32x32xf32>
    %cst_16 = arith.constant dense<0.000000e+00> : vector<16x32xf32>
    %35 = tpu.matmul %33, %34, %cst_16 {dimension_numbers = #tpu.dot_dimension_numbers<[1], [0], [0], [1], [0, 0, 1, 1], [], []>} : vector<16x32xf32>, vector<32x32xf32>, vector<16x32xf32> -> vector<16x32xf32>
    %c0_17 = arith.constant 0 : index
    %c96 = arith.constant 96 : index
    %36 = vector.load %arg3[%c0_17, %c96] : memref<1x128xf32, #tpu.memory_space<vmem>>, vector<1x32xf32>
    %37 = vector.broadcast %36 : vector<1x32xf32> to vector<16x32xf32>
    %38 = arith.addf %35, %37 : vector<16x32xf32>
    %c0_18 = arith.constant 0 : index
    %c0_19 = arith.constant 0 : index
    %39 = vector.load %arg5[%c0_18, %c0_19] : memref<16x32xf32, #tpu.memory_space<vmem>>, vector<16x32xf32>
    tpu.vector_store %arg5[%c0_18, %c0_19], %38 {strides = array<i32>} : memref<16x32xf32, #tpu.memory_space<vmem>>, vector<16x32xf32>,
    return
  }
}

</mosaic_0001>

<llo_original>
// kernel: tpu_custom_call.1
$region0: #{tpu_custom_call.1}
  #allocation0 [shape = 'u32[]', space=smem, size = 0x4, offset = 0x4, fixed_abs, tag = 'smem constant byte address 0x4 - core index']
  #allocation1 [shape = 'u32[144,128]{1,0:T(1,128)}', space=vmem, size = 0x12000, scoped, tag = 'internal scratch']
  %s0 = inlined_call_operand.hbm [shape: f32[16,32], index: 0, kind: input, shape index: {}]
  %s1 = inlined_call_operand.vmem [shape: s32[2,8], index: 1, kind: input, shape index: {}]
  %s2 = inlined_call_operand.hbm [shape: f32[32,96], index: 2, kind: input, shape index: {}]
  %s3 = inlined_call_operand.vmem [shape: f32[1,128], index: 3, kind: input, shape index: {}]
  %s4 = inlined_call_operand.hbm [shape: f32[32,32], index: 4, kind: input, shape index: {}]
  %s5 = inlined_call_operand.hbm [shape: f32[16,32], index: 5, kind: output, shape index: {}]
  %s6 = sld [smem:[#allocation0]]
  $region42: #{tpu_custom_call.1} parent=0
    _
  %s8 = ssub.s32 1, %s6
  %s9 = scalar_select 0, %s8, %s6
  $region1: #{tpu_custom_call.1} parent=0
    #allocation2 [shape = 'u8[8192]{0}', space=vmem, size = 0x2000, scoped, tag = 'input window, operand 0, single buffered']
    #allocation3 [shape = 's32[1]{0}', space=sflag, size = 0x4, scoped, tag = 'scoped memory for tpu_custom_call.1']
    #allocation4 [shape = 's32[1]{0}', space=sflag, size = 0x4, scoped, tag = 'scoped memory for tpu_custom_call.1']
    #allocation5 [shape = 'u8[16384]{0}', space=vmem, size = 0x4000, scoped, tag = 'input window, operand 2, single buffered']
    #allocation6 [shape = 's32[1]{0}', space=sflag, size = 0x4, scoped, tag = 'scoped memory for tpu_custom_call.1']
    #allocation7 [shape = 'u8[16384]{0}', space=vmem, size = 0x4000, scoped, tag = 'input window, operand 4, single buffered']
    #allocation8 [shape = 'u8[8192]{0}', space=vmem, size = 0x2000, scoped, tag = 'output window, operand 0, single buffered']
    %10 = vsyncpa [#allocation3], 0
    %11 = vsyncpa [#allocation6], 0
    %12 = vsyncpa [#allocation4], 0
    // Predicated region
    $region2: #{tpu_custom_call.1} parent=1 // pred_check
      _
    $region3: #{tpu_custom_call.1} parent=1 // pred_check_branch
      %14 = sbr.rel (0) target = $region5
    $region4: #{tpu_custom_call.1} parent=1 // pred_region
      %s16 = ssub.s32 256, 256
      %17 = vsyncadd [#allocation3], %s16
      %s18 = sshll.u32 [#allocation2], 4
      %s19 = int_to_ptr.vmem [resolvable:$true] %s18
      %24 = dma.hbm_to_vmem [thread:$0]  %s0, 256, %s19, [#allocation3], 128, 128, 8
    $region5: #{tpu_custom_call.1} parent=1 // pred_fallthru
      _
    // Predicated region
    $region6: #{tpu_custom_call.1} parent=1 // pred_check
      _
    $region7: #{tpu_custom_call.1} parent=1 // pred_check_branch
      %26 = sbr.rel (0) target = $region9
    $region8: #{tpu_custom_call.1} parent=1 // pred_region
      _
    $region9: #{tpu_custom_call.1} parent=1 // pred_fallthru
      _
    // Predicated region
    $region10: #{tpu_custom_call.1} parent=1 // pred_check
      _
    $region11: #{tpu_custom_call.1} parent=1 // pred_check_branch
      %28 = sbr.rel (0) target = $region13
    $region12: #{tpu_custom_call.1} parent=1 // pred_region
      %s30 = ssub.s32 512, 512
      %31 = vsyncadd [#allocation6], %s30
      %s32 = sshll.u32 [#allocation5], 4
      %s33 = int_to_ptr.vmem [resolvable:$true] %s32
      %38 = dma.hbm_to_vmem [thread:$0]  %s2, 512, %s33, [#allocation6], 128, 128, 8
    $region13: #{tpu_custom_call.1} parent=1 // pred_fallthru
      _
    // Predicated region
    $region14: #{tpu_custom_call.1} parent=1 // pred_check
      _
    $region15: #{tpu_custom_call.1} parent=1 // pred_check_branch
      %40 = sbr.rel (0) target = $region17
    $region16: #{tpu_custom_call.1} parent=1 // pred_region
      _
    $region17: #{tpu_custom_call.1} parent=1 // pred_fallthru
      _
    // Predicated region
    $region18: #{tpu_custom_call.1} parent=1 // pred_check
      _
    $region19: #{tpu_custom_call.1} parent=1 // pred_check_branch
      %42 = sbr.rel (0) target = $region21
    $region20: #{tpu_custom_call.1} parent=1 // pred_region
      %s44 = ssub.s32 512, 512
      %45 = vsyncadd [#allocation6], %s44
      %s46 = sshll.u32 [#allocation7], 4
      %s47 = int_to_ptr.vmem [resolvable:$true] %s46
      %52 = dma.hbm_to_vmem [thread:$0]  %s4, 512, %s47, [#allocation6], 128, 128, 8
    $region21: #{tpu_custom_call.1} parent=1 // pred_fallthru
      _
    // Predicated region
    $region22: #{tpu_custom_call.1} parent=1 // pred_check
      _
    $region23: #{tpu_custom_call.1} parent=1 // pred_check_branch
      %54 = sbr.rel (0) target = $region25
    $region24: #{tpu_custom_call.1} parent=1 // pred_region
      %55 = dma.done [#allocation3], 256
    $region25: #{tpu_custom_call.1} parent=1 // pred_fallthru
      _
    // Predicated region
    $region26: #{tpu_custom_call.1} parent=1 // pred_check
      _
    $region27: #{tpu_custom_call.1} parent=1 // pred_check_branch
      %57 = sbr.rel (0) target = $region29
    $region28: #{tpu_custom_call.1} parent=1 // pred_region
      %58 = dma.done [#allocation6], 512
    $region29: #{tpu_custom_call.1} parent=1 // pred_fallthru
      _
    // Predicated region
    $region30: #{tpu_custom_call.1} parent=1 // pred_check
      _
    $region31: #{tpu_custom_call.1} parent=1 // pred_check_branch
      %60 = sbr.rel (0) target = $region33
    $region32: #{tpu_custom_call.1} parent=1 // pred_region
      %61 = dma.done [#allocation6], 512
    $region33: #{tpu_custom_call.1} parent=1 // pred_fallthru
      _
    %v62 = vld [vmem:[#allocation2] sm:$0xff]
    %v63 = vld [vmem:[#allocation2 + $0x8] sm:$0xff]
    %v64 = vld [vmem:[#allocation5] sm:$0xff]
    %v65 = vld [vmem:[#allocation5 + $0x8] sm:$0xff]
    %v66 = vld [vmem:[#allocation5 + $0x10] sm:$0xff]
    %v67 = vld [vmem:[#allocation5 + $0x18] sm:$0xff]
    %v68 = vld [vmem:[%s3] sm:$0x1]
    %v70 = vlaneseq
    %v71 = vshrl.u32 %v70, 7
    %v72 = vsub.s32 0, %v71
    %v73 = vrot.slane %v68, %v72
    %vm75 = vcmask 261120
    %v77 = vsel %vm75, %v62, 0
    %v80 = vsel %vm75, %v63, 0
    %82 = vmatprep.subr.mxu0 0.0
    %83 = vmatpush1.msra.mxu0 %v64
    %84 = vmatprep.subr.mxu0 0.0
    %85 = vmatpush1.msra.mxu0 %v65
    %86 = vmatprep.subr.mxu0 0.0
    %87 = vmatpush1.msra.mxu0 %v66
    %88 = vmatprep.subr.mxu0 0.0
    %89 = vmatpush1.msra.mxu0 %v67
    %90 = vmatprep.subr.mxu0 0.0
    %91 = vmatpush1.msra.mxu0 0.0
    %92 = vmatprep.subr.mxu0 0.0
    %93 = vmatpush1.msra.mxu0 0.0
    %94 = vmatprep.subr.mxu0 0.0
    %95 = vmatpush1.msra.mxu0 0.0
    %96 = vmatprep.subr.mxu0 0.0
    %97 = vmatpush1.msra.mxu0 0.0
    %98 = vmatprep.subr.mxu0 0.0
    %99 = vmatpush1.msra.mxu0 0.0
    %100 = vmatprep.subr.mxu0 0.0
    %101 = vmatpush1.msra.mxu0 0.0
    %102 = vmatprep.subr.mxu0 0.0
    %103 = vmatpush1.msra.mxu0 0.0
    %104 = vmatprep.subr.mxu0 0.0
    %105 = vmatpush1.msra.mxu0 0.0
    %106 = vmatprep.subr.mxu0 0.0
    %107 = vmatpush1.msra.mxu0 0.0
    %108 = vmatprep.subr.mxu0 0.0
    %109 = vmatpush1.msra.mxu0 0.0
    %110 = vmatprep.subr.mxu0 0.0
    %111 = vmatpush1.msra.mxu0 0.0
    %112 = vmatprep.subr.mxu0 0.0
    %113 = vmatpush1.msra.mxu0 0.0
    %114 = vmatprep.subr.mxu0 0.0
    %115 = vmatpush1.msra.mxu0 0.0
    %116 = vmatprep.subr.mxu0 0.0
    %117 = vmatpush1.msra.mxu0 0.0
    %118 = vmatprep.subr.mxu0 0.0
    %119 = vmatpush1.msra.mxu0 0.0
    %120 = vmatprep.subr.mxu0 0.0
    %121 = vmatpush1.msra.mxu0 0.0
    %122 = vmatprep.subr.mxu0 0.0
    %123 = vmatpush1.msra.mxu0 0.0
    %124 = vmatprep.subr.mxu0 0.0
    %125 = vmatpush1.msra.mxu0 0.0
    %126 = vmatprep.subr.mxu0 0.0
    %127 = vmatpush1.msra.mxu0 0.0
    %128 = vmatprep.subr.mxu0 0.0
    %129 = vmatpush1.msra.mxu0 0.0
    %130 = vmatprep.subr.mxu0 0.0
    %131 = vmatpush1.msra.mxu0 0.0
    %132 = vmatprep.subr.mxu0 0.0
    %133 = vmatpush1.msra.mxu0 0.0
    %134 = vmatprep.subr.mxu0 0.0
    %135 = vmatpush1.msra.mxu0 0.0
    %136 = vmatprep.subr.mxu0 0.0
    %137 = vmatpush1.msra.mxu0 0.0
    %138 = vmatprep.subr.mxu0 0.0
    %139 = vmatpush1.msra.mxu0 0.0
    %140 = vmatprep.subr.mxu0 0.0
    %141 = vmatpush1.msra.mxu0 0.0
    %142 = vmatprep.subr.mxu0 0.0
    %143 = vmatpush1.msra.mxu0 0.0
    %144 = vmatprep.subr.mxu0 0.0
    %145 = vmatpush1.msra.mxu0 0.0
    %146 = vmatprep.mubr.f32.mxu0 0.0
    %147 = vmatmul.mubr.f32.gmra.mrb[0].mxu0 %v77
    %v148 = vpop.f32.mrb[0].mxu0
    %v149 = vadd.f32 %v73, %v148
    %v150 = vpop.f32.mrb[0].mxu0
    %151 = vmatprep.mubr.f32.mxu0 0.0
    %152 = vmatmul.mubr.f32.gmra.mrb[0].mxu0 %v80
    %v153 = vpop.f32.mrb[0].mxu0
    %v154 = vadd.f32 %v73, %v153
    %v155 = vpop.f32.mrb[0].mxu0
    %156 = vdwg.mxu0
    %v157 = vld [vmem:[%s1] sm:$0x3]
    %vm158 = vcmp.ne.s32.totalorder %v157, 0
    %v159 = vsel %vm158, -1e+09, 0.0
    %161 = vrot.lane.b32.xlu0 %v149, 96
    %v162 = vpop.permute.xlu0 %161
    %v163 = vsel %vm75, %v149, 0
    %v165 = vsel %vm75, %v162, 0
    %167 = vmatprep.subr.mxu0 0.0
    %168 = vmatpush1.xpose.msra.mxu0 %v165
    %169 = vmatprep.subr.mxu0 0.0
    %170 = vmatpush1.xpose.msra.mxu0 0.0
    %171 = vmatprep.subr.mxu0 0.0
    %172 = vmatpush1.xpose.msra.mxu0 0.0
    %173 = vmatprep.subr.mxu0 0.0
    %174 = vmatpush1.xpose.msra.mxu0 0.0
    %175 = vmatprep.subr.mxu0 0.0
    %176 = vmatpush1.xpose.msra.mxu0 0.0
    %177 = vmatprep.subr.mxu0 0.0
    %178 = vmatpush1.xpose.msra.mxu0 0.0
    %179 = vmatprep.subr.mxu0 0.0
    %180 = vmatpush1.xpose.msra.mxu0 0.0
    %181 = vmatprep.subr.mxu0 0.0
    %182 = vmatpush1.xpose.msra.mxu0 0.0
    %183 = vmatprep.subr.mxu0 0.0
    %184 = vmatpush1.xpose.msra.mxu0 0.0
    %185 = vmatprep.subr.mxu0 0.0
    %186 = vmatpush1.xpose.msra.mxu0 0.0
    %187 = vmatprep.subr.mxu0 0.0
    %188 = vmatpush1.xpose.msra.mxu0 0.0
    %189 = vmatprep.subr.mxu0 0.0
    %190 = vmatpush1.xpose.msra.mxu0 0.0
    %191 = vmatprep.subr.mxu0 0.0
    %192 = vmatpush1.xpose.msra.mxu0 0.0
    %193 = vmatprep.subr.mxu0 0.0
    %194 = vmatpush1.xpose.msra.mxu0 0.0
    %195 = vmatprep.subr.mxu0 0.0
    %196 = vmatpush1.xpose.msra.mxu0 0.0
    %197 = vmatprep.subr.mxu0 0.0
    %198 = vmatpush1.xpose.msra.mxu0 0.0
    %199 = vmatprep.subr.mxu0 0.0
    %200 = vmatpush1.xpose.msra.mxu0 0.0
    %201 = vmatprep.subr.mxu0 0.0
    %202 = vmatpush1.xpose.msra.mxu0 0.0
    %203 = vmatprep.subr.mxu0 0.0
    %204 = vmatpush1.xpose.msra.mxu0 0.0
    %205 = vmatprep.subr.mxu0 0.0
    %206 = vmatpush1.xpose.msra.mxu0 0.0
    %207 = vmatprep.subr.mxu0 0.0
    %208 = vmatpush1.xpose.msra.mxu0 0.0
    %209 = vmatprep.subr.mxu0 0.0
    %210 = vmatpush1.xpose.msra.mxu0 0.0
    %211 = vmatprep.subr.mxu0 0.0
    %212 = vmatpush1.xpose.msra.mxu0 0.0
    %213 = vmatprep.subr.mxu0 0.0
    %214 = vmatpush1.xpose.msra.mxu0 0.0
    %215 = vmatprep.subr.mxu0 0.0
    %216 = vmatpush1.xpose.msra.mxu0 0.0
    %217 = vmatprep.subr.mxu0 0.0
    %218 = vmatpush1.xpose.msra.mxu0 0.0
    %219 = vmatprep.subr.mxu0 0.0
    %220 = vmatpush1.xpose.msra.mxu0 0.0
    %221 = vmatprep.subr.mxu0 0.0
    %222 = vmatpush1.xpose.msra.mxu0 0.0
    %223 = vmatprep.subr.mxu0 0.0
    %224 = vmatpush1.xpose.msra.mxu0 0.0
    %225 = vmatprep.subr.mxu0 0.0
    %226 = vmatpush1.xpose.msra.mxu0 0.0
    %227 = vmatprep.subr.mxu0 0.0
    %228 = vmatpush1.xpose.msra.mxu0 0.0
    %229 = vmatprep.subr.mxu0 0.0
    %230 = vmatpush1.xpose.msra.mxu0 0.0
    %231 = vmatprep.mubr.f32.mxu0 0.0
    %232 = vmatmul.mubr.f32.gmra.mrb[0].mxu0 %v163
    %v233 = vpop.f32.mrb[0].mxu0
    %v234 = vadd.f32 0.0, %v233
    %v235 = vpop.f32.mrb[0].mxu0
    %236 = vdwg.mxu0
    %238 = vrot.lane.b32.xlu0 %v154, 96
    %v239 = vpop.permute.xlu0 %238
    %v240 = vsel %vm75, %v154, 0
    %v242 = vsel %vm75, %v239, 0
    %244 = vmatprep.subr.mxu0 0.0
    %245 = vmatpush1.xpose.msra.mxu0 %v242
    %246 = vmatprep.subr.mxu0 0.0
    %247 = vmatpush1.xpose.msra.mxu0 0.0
    %248 = vmatprep.subr.mxu0 0.0
    %249 = vmatpush1.xpose.msra.mxu0 0.0
    %250 = vmatprep.subr.mxu0 0.0
    %251 = vmatpush1.xpose.msra.mxu0 0.0
    %252 = vmatprep.subr.mxu0 0.0
    %253 = vmatpush1.xpose.msra.mxu0 0.0
    %254 = vmatprep.subr.mxu0 0.0
    %255 = vmatpush1.xpose.msra.mxu0 0.0
    %256 = vmatprep.subr.mxu0 0.0
    %257 = vmatpush1.xpose.msra.mxu0 0.0
    %258 = vmatprep.subr.mxu0 0.0
    %259 = vmatpush1.xpose.msra.mxu0 0.0
    %260 = vmatprep.subr.mxu0 0.0
    %261 = vmatpush1.xpose.msra.mxu0 0.0
    %262 = vmatprep.subr.mxu0 0.0
    %263 = vmatpush1.xpose.msra.mxu0 0.0
    %264 = vmatprep.subr.mxu0 0.0
    %265 = vmatpush1.xpose.msra.mxu0 0.0
    %266 = vmatprep.subr.mxu0 0.0
    %267 = vmatpush1.xpose.msra.mxu0 0.0
    %268 = vmatprep.subr.mxu0 0.0
    %269 = vmatpush1.xpose.msra.mxu0 0.0
    %270 = vmatprep.subr.mxu0 0.0
    %271 = vmatpush1.xpose.msra.mxu0 0.0
    %272 = vmatprep.subr.mxu0 0.0
    %273 = vmatpush1.xpose.msra.mxu0 0.0
    %274 = vmatprep.subr.mxu0 0.0
    %275 = vmatpush1.xpose.msra.mxu0 0.0
    %276 = vmatprep.subr.mxu0 0.0
    %277 = vmatpush1.xpose.msra.mxu0 0.0
    %278 = vmatprep.subr.mxu0 0.0
    %279 = vmatpush1.xpose.msra.mxu0 0.0
    %280 = vmatprep.subr.mxu0 0.0
    %281 = vmatpush1.xpose.msra.mxu0 0.0
    %282 = vmatprep.subr.mxu0 0.0
    %283 = vmatpush1.xpose.msra.mxu0 0.0
    %284 = vmatprep.subr.mxu0 0.0
    %285 = vmatpush1.xpose.msra.mxu0 0.0
    %286 = vmatprep.subr.mxu0 0.0
    %287 = vmatpush1.xpose.msra.mxu0 0.0
    %288 = vmatprep.subr.mxu0 0.0
    %289 = vmatpush1.xpose.msra.mxu0 0.0
    %290 = vmatprep.subr.mxu0 0.0
    %291 = vmatpush1.xpose.msra.mxu0 0.0
    %292 = vmatprep.subr.mxu0 0.0
    %293 = vmatpush1.xpose.msra.mxu0 0.0
    %294 = vmatprep.subr.mxu0 0.0
    %295 = vmatpush1.xpose.msra.mxu0 0.0
    %296 = vmatprep.subr.mxu0 0.0
    %297 = vmatpush1.xpose.msra.mxu0 0.0
    %298 = vmatprep.subr.mxu0 0.0
    %299 = vmatpush1.xpose.msra.mxu0 0.0
    %300 = vmatprep.subr.mxu0 0.0
    %301 = vmatpush1.xpose.msra.mxu0 0.0
    %302 = vmatprep.subr.mxu0 0.0
    %303 = vmatpush1.xpose.msra.mxu0 0.0
    %304 = vmatprep.subr.mxu0 0.0
    %305 = vmatpush1.xpose.msra.mxu0 0.0
    %306 = vmatprep.subr.mxu0 0.0
    %307 = vmatpush1.xpose.msra.mxu0 0.0
    %308 = vmatprep.mubr.f32.mxu0 0.0
    %309 = vmatmul.mubr.f32.gmra.mrb[0].mxu0 %v240
    %v310 = vpop.f32.mrb[0].mxu0
    %v311 = vadd.f32 0.0, %v310
    %v312 = vpop.f32.mrb[0].mxu0
    %313 = vdwg.mxu0
    %v314 = vmul.f32 %v234, 0.17677669
    %v315 = vmul.f32 %v311, 0.17677669
    %v318 = vunpack.c.l.s4 1966171168
    %v319 = vunpack.c.0.s8 %v318
    %v320 = vlaneseq
    %v321 = vshrl.u32 %v320, 7
    %v322 = vsub.s32 %v319, %v321
    %v323 = vrot.slane %v159, %v322
    %v324 = vcombine.high %v323, %v323
    %v326 = vunpack.c.l.s4 1966171168
    %v327 = vunpack.c.0.s8 %v326
    %v328 = vlaneseq
    %v329 = vshrl.u32 %v328, 7
    %v330 = vsub.s32 %v327, %v329
    %v331 = vrot.slane %v323, %v330
    %v333 = vunpack.c.l.s4 1966171168
    %v334 = vunpack.c.0.s8 %v333
    %v335 = vlaneseq
    %v336 = vshrl.u32 %v335, 7
    %v337 = vsub.s32 %v334, %v336
    %v338 = vrot.slane %v324, %v337
    %v339 = vlaneseq
    %v340 = vshrl.u32 %v339, 7
    %v341 = vsub.s32 0, %v340
    %v342 = vrot.slane %v331, %v341
    %v343 = vlaneseq
    %v344 = vshrl.u32 %v343, 7
    %v345 = vsub.s32 0, %v344
    %v346 = vrot.slane %v338, %v345
    %v349 = vadd.f32 %v314, %v342
    %v350 = vadd.f32 %v315, %v346
    %vm351 = vcmask 64512
    %v352 = vsel %vm351, %v349, -inf
    %353 = vmax.xlane.f32.xlu0 %v352
    %v354 = vpop.xlane.xlu0 %353
    %v355 = vsel %vm351, %v350, -inf
    %356 = vmax.xlane.f32.xlu0 %v355
    %v357 = vpop.xlane.xlu0 %356
    %v358 = vsub.f32 %v349, %v354
    %v359 = vsub.f32 %v350, %v357
    %v360 = vmul.f32 %v358, 1.442695
    %v361 = vpow.pop %v360
    %v362 = vmul.f32 %v359, 1.442695
    %v363 = vpow.pop %v362
    %v364 = vsel %vm351, %v361, 0.0
    %365 = vadd.xlane.f32.xlu0 %v364
    %v366 = vpop.xlane.xlu0 %365
    %v367 = vsel %vm351, %v363, 0.0
    %368 = vadd.xlane.f32.xlu0 %v367
    %v369 = vpop.xlane.xlu0 %368
    %v370 = vrcp.pop %v366
    %v371 = vrcp.pop %v369
    %v372 = vmul.f32 %v361, %v370
    %v373 = vmul.f32 %v363, %v371
    %374 = vrot.lane.b32.xlu0 %v149, 64
    %v375 = vpop.permute.xlu0 %374
    %v378 = vsel %vm351, %v372, 0
    %380 = vmatprep.subr.mxu0 0.0
    %381 = vmatpush1.msra.mxu0 %v375
    %382 = vmatprep.subr.mxu0 0.0
    %383 = vmatpush1.msra.mxu0 0.0
    %384 = vmatprep.subr.mxu0 0.0
    %385 = vmatpush1.msra.mxu0 0.0
    %386 = vmatprep.subr.mxu0 0.0
    %387 = vmatpush1.msra.mxu0 0.0
    %388 = vmatprep.subr.mxu0 0.0
    %389 = vmatpush1.msra.mxu0 0.0
    %390 = vmatprep.subr.mxu0 0.0
    %391 = vmatpush1.msra.mxu0 0.0
    %392 = vmatprep.subr.mxu0 0.0
    %393 = vmatpush1.msra.mxu0 0.0
    %394 = vmatprep.subr.mxu0 0.0
    %395 = vmatpush1.msra.mxu0 0.0
    %396 = vmatprep.subr.mxu0 0.0
    %397 = vmatpush1.msra.mxu0 0.0
    %398 = vmatprep.subr.mxu0 0.0
    %399 = vmatpush1.msra.mxu0 0.0
    %400 = vmatprep.subr.mxu0 0.0
    %401 = vmatpush1.msra.mxu0 0.0
    %402 = vmatprep.subr.mxu0 0.0
    %403 = vmatpush1.msra.mxu0 0.0
    %404 = vmatprep.subr.mxu0 0.0
    %405 = vmatpush1.msra.mxu0 0.0
    %406 = vmatprep.subr.mxu0 0.0
    %407 = vmatpush1.msra.mxu0 0.0
    %408 = vmatprep.subr.mxu0 0.0
    %409 = vmatpush1.msra.mxu0 0.0
    %410 = vmatprep.subr.mxu0 0.0
    %411 = vmatpush1.msra.mxu0 0.0
    %412 = vmatprep.subr.mxu0 0.0
    %413 = vmatpush1.msra.mxu0 0.0
    %414 = vmatprep.subr.mxu0 0.0
    %415 = vmatpush1.msra.mxu0 0.0
    %416 = vmatprep.subr.mxu0 0.0
    %417 = vmatpush1.msra.mxu0 0.0
    %418 = vmatprep.subr.mxu0 0.0
    %419 = vmatpush1.msra.mxu0 0.0
    %420 = vmatprep.subr.mxu0 0.0
    %421 = vmatpush1.msra.mxu0 0.0
    %422 = vmatprep.subr.mxu0 0.0
    %423 = vmatpush1.msra.mxu0 0.0
    %424 = vmatprep.subr.mxu0 0.0
    %425 = vmatpush1.msra.mxu0 0.0
    %426 = vmatprep.subr.mxu0 0.0
    %427 = vmatpush1.msra.mxu0 0.0
    %428 = vmatprep.subr.mxu0 0.0
    %429 = vmatpush1.msra.mxu0 0.0
    %430 = vmatprep.subr.mxu0 0.0
    %431 = vmatpush1.msra.mxu0 0.0
    %432 = vmatprep.subr.mxu0 0.0
    %433 = vmatpush1.msra.mxu0 0.0
    %434 = vmatprep.subr.mxu0 0.0
    %435 = vmatpush1.msra.mxu0 0.0
    %436 = vmatprep.subr.mxu0 0.0
    %437 = vmatpush1.msra.mxu0 0.0
    %438 = vmatprep.subr.mxu0 0.0
    %439 = vmatpush1.msra.mxu0 0.0
    %440 = vmatprep.subr.mxu0 0.0
    %441 = vmatpush1.msra.mxu0 0.0
    %442 = vmatprep.subr.mxu0 0.0
    %443 = vmatpush1.msra.mxu0 0.0
    %444 = vmatprep.mubr.f32.mxu0 0.0
    %445 = vmatmul.mubr.f32.gmra.mrb[0].mxu0 %v378
    %v446 = vpop.f32.mrb[0].mxu0
    %v447 = vadd.f32 0.0, %v446
    %v448 = vpop.f32.mrb[0].mxu0
    %449 = vdwg.mxu0
    %450 = vrot.lane.b32.xlu0 %v154, 64
    %v451 = vpop.permute.xlu0 %450
    %v454 = vsel %vm351, %v373, 0
    %456 = vmatprep.subr.mxu0 0.0
    %457 = vmatpush1.msra.mxu0 %v451
    %458 = vmatprep.subr.mxu0 0.0
    %459 = vmatpush1.msra.mxu0 0.0
    %460 = vmatprep.subr.mxu0 0.0
    %461 = vmatpush1.msra.mxu0 0.0
    %462 = vmatprep.subr.mxu0 0.0
    %463 = vmatpush1.msra.mxu0 0.0
    %464 = vmatprep.subr.mxu0 0.0
    %465 = vmatpush1.msra.mxu0 0.0
    %466 = vmatprep.subr.mxu0 0.0
    %467 = vmatpush1.msra.mxu0 0.0
    %468 = vmatprep.subr.mxu0 0.0
    %469 = vmatpush1.msra.mxu0 0.0
    %470 = vmatprep.subr.mxu0 0.0
    %471 = vmatpush1.msra.mxu0 0.0
    %472 = vmatprep.subr.mxu0 0.0
    %473 = vmatpush1.msra.mxu0 0.0
    %474 = vmatprep.subr.mxu0 0.0
    %475 = vmatpush1.msra.mxu0 0.0
    %476 = vmatprep.subr.mxu0 0.0
    %477 = vmatpush1.msra.mxu0 0.0
    %478 = vmatprep.subr.mxu0 0.0
    %479 = vmatpush1.msra.mxu0 0.0
    %480 = vmatprep.subr.mxu0 0.0
    %481 = vmatpush1.msra.mxu0 0.0
    %482 = vmatprep.subr.mxu0 0.0
    %483 = vmatpush1.msra.mxu0 0.0
    %484 = vmatprep.subr.mxu0 0.0
    %485 = vmatpush1.msra.mxu0 0.0
    %486 = vmatprep.subr.mxu0 0.0
    %487 = vmatpush1.msra.mxu0 0.0
    %488 = vmatprep.subr.mxu0 0.0
    %489 = vmatpush1.msra.mxu0 0.0
    %490 = vmatprep.subr.mxu0 0.0
    %491 = vmatpush1.msra.mxu0 0.0
    %492 = vmatprep.subr.mxu0 0.0
    %493 = vmatpush1.msra.mxu0 0.0
    %494 = vmatprep.subr.mxu0 0.0
    %495 = vmatpush1.msra.mxu0 0.0
    %496 = vmatprep.subr.mxu0 0.0
    %497 = vmatpush1.msra.mxu0 0.0
    %498 = vmatprep.subr.mxu0 0.0
    %499 = vmatpush1.msra.mxu0 0.0
    %500 = vmatprep.subr.mxu0 0.0
    %501 = vmatpush1.msra.mxu0 0.0
    %502 = vmatprep.subr.mxu0 0.0
    %503 = vmatpush1.msra.mxu0 0.0
    %504 = vmatprep.subr.mxu0 0.0
    %505 = vmatpush1.msra.mxu0 0.0
    %506 = vmatprep.subr.mxu0 0.0
    %507 = vmatpush1.msra.mxu0 0.0
    %508 = vmatprep.subr.mxu0 0.0
    %509 = vmatpush1.msra.mxu0 0.0
    %510 = vmatprep.subr.mxu0 0.0
    %511 = vmatpush1.msra.mxu0 0.0
    %512 = vmatprep.subr.mxu0 0.0
    %513 = vmatpush1.msra.mxu0 0.0
    %514 = vmatprep.subr.mxu0 0.0
    %515 = vmatpush1.msra.mxu0 0.0
    %516 = vmatprep.subr.mxu0 0.0
    %517 = vmatpush1.msra.mxu0 0.0
    %518 = vmatprep.subr.mxu0 0.0
    %519 = vmatpush1.msra.mxu0 0.0
    %520 = vmatprep.mubr.f32.mxu0 0.0
    %521 = vmatmul.mubr.f32.gmra.mrb[0].mxu0 %v454
    %v522 = vpop.f32.mrb[0].mxu0
    %v523 = vadd.f32 0.0, %v522
    %v524 = vpop.f32.mrb[0].mxu0
    %525 = vdwg.mxu0
    %v526 = vld [vmem:[#allocation7] sm:$0xff]
    %v527 = vld [vmem:[#allocation7 + $0x8] sm:$0xff]
    %v528 = vld [vmem:[#allocation7 + $0x10] sm:$0xff]
    %v529 = vld [vmem:[#allocation7 + $0x18] sm:$0xff]
    %v530 = vld [vmem:[%s3] sm:$0x1]
    %v532 = vlaneseq
    %v533 = vshrl.u32 %v532, 7
    %v534 = vsub.s32 0, %v533
    %v535 = vrot.slane %v530, %v534
    %536 = vrot.lane.b32.xlu0 %v535, 32
    %v537 = vpop.permute.xlu0 %536
    %v540 = vsel %vm75, %v447, 0
    %v543 = vsel %vm75, %v523, 0
    %545 = vmatprep.subr.mxu0 0.0
    %546 = vmatpush1.msra.mxu0 %v526
    %547 = vmatprep.subr.mxu0 0.0
    %548 = vmatpush1.msra.mxu0 %v527
    %549 = vmatprep.subr.mxu0 0.0
    %550 = vmatpush1.msra.mxu0 %v528
    %551 = vmatprep.subr.mxu0 0.0
    %552 = vmatpush1.msra.mxu0 %v529
    %553 = vmatprep.subr.mxu0 0.0
    %554 = vmatpush1.msra.mxu0 0.0
    %555 = vmatprep.subr.mxu0 0.0
    %556 = vmatpush1.msra.mxu0 0.0
    %557 = vmatprep.subr.mxu0 0.0
    %558 = vmatpush1.msra.mxu0 0.0
    %559 = vmatprep.subr.mxu0 0.0
    %560 = vmatpush1.msra.mxu0 0.0
    %561 = vmatprep.subr.mxu0 0.0
    %562 = vmatpush1.msra.mxu0 0.0
    %563 = vmatprep.subr.mxu0 0.0
    %564 = vmatpush1.msra.mxu0 0.0
    %565 = vmatprep.subr.mxu0 0.0
    %566 = vmatpush1.msra.mxu0 0.0
    %567 = vmatprep.subr.mxu0 0.0
    %568 = vmatpush1.msra.mxu0 0.0
    %569 = vmatprep.subr.mxu0 0.0
    %570 = vmatpush1.msra.mxu0 0.0
    %571 = vmatprep.subr.mxu0 0.0
    %572 = vmatpush1.msra.mxu0 0.0
    %573 = vmatprep.subr.mxu0 0.0
    %574 = vmatpush1.msra.mxu0 0.0
    %575 = vmatprep.subr.mxu0 0.0
    %576 = vmatpush1.msra.mxu0 0.0
    %577 = vmatprep.subr.mxu0 0.0
    %578 = vmatpush1.msra.mxu0 0.0
    %579 = vmatprep.subr.mxu0 0.0
    %580 = vmatpush1.msra.mxu0 0.0
    %581 = vmatprep.subr.mxu0 0.0
    %582 = vmatpush1.msra.mxu0 0.0
    %583 = vmatprep.subr.mxu0 0.0
    %584 = vmatpush1.msra.mxu0 0.0
    %585 = vmatprep.subr.mxu0 0.0
    %586 = vmatpush1.msra.mxu0 0.0
    %587 = vmatprep.subr.mxu0 0.0
    %588 = vmatpush1.msra.mxu0 0.0
    %589 = vmatprep.subr.mxu0 0.0
    %590 = vmatpush1.msra.mxu0 0.0
    %591 = vmatprep.subr.mxu0 0.0
    %592 = vmatpush1.msra.mxu0 0.0
    %593 = vmatprep.subr.mxu0 0.0
    %594 = vmatpush1.msra.mxu0 0.0
    %595 = vmatprep.subr.mxu0 0.0
    %596 = vmatpush1.msra.mxu0 0.0
    %597 = vmatprep.subr.mxu0 0.0
    %598 = vmatpush1.msra.mxu0 0.0
    %599 = vmatprep.subr.mxu0 0.0
    %600 = vmatpush1.msra.mxu0 0.0
    %601 = vmatprep.subr.mxu0 0.0
    %602 = vmatpush1.msra.mxu0 0.0
    %603 = vmatprep.subr.mxu0 0.0
    %604 = vmatpush1.msra.mxu0 0.0
    %605 = vmatprep.subr.mxu0 0.0
    %606 = vmatpush1.msra.mxu0 0.0
    %607 = vmatprep.subr.mxu0 0.0
    %608 = vmatpush1.msra.mxu0 0.0
    %609 = vmatprep.mubr.f32.mxu0 0.0
    %610 = vmatmul.mubr.f32.gmra.mrb[0].mxu0 %v540
    %v611 = vpop.f32.mrb[0].mxu0
    %v612 = vadd.f32 %v537, %v611
    %v613 = vpop.f32.mrb[0].mxu0
    %614 = vmatprep.mubr.f32.mxu0 0.0
    %615 = vmatmul.mubr.f32.gmra.mrb[0].mxu0 %v543
    %v616 = vpop.f32.mrb[0].mxu0
    %v617 = vadd.f32 %v537, %v616
    %v618 = vpop.f32.mrb[0].mxu0
    %619 = vdwg.mxu0
    %620 = vst.msk [vmem:[#allocation8] sm:$0xff] %vm75, %v612
    %621 = vst.msk [vmem:[#allocation8 + $0x8] sm:$0xff] %vm75, %v617
    // Predicated region
    $region34: #{tpu_custom_call.1} parent=1 // pred_check
      _
    $region35: #{tpu_custom_call.1} parent=1 // pred_check_branch
      %623 = sbr.rel (0) target = $region37
    $region36: #{tpu_custom_call.1} parent=1 // pred_region
      %s625 = ssub.s32 256, 256
      %626 = vsyncadd [#allocation4], %s625
      %s627 = sshll.u32 [#allocation8], 4
      %s628 = int_to_ptr.vmem [resolvable:$true] %s627
      %633 = dma.vmem_to_hbm [thread:$0]  %s628, 256, %s5, [#allocation4], 128, 128, 8
    $region37: #{tpu_custom_call.1} parent=1 // pred_fallthru
      _
    // Predicated region
    $region38: #{tpu_custom_call.1} parent=1 // pred_check
      _
    $region39: #{tpu_custom_call.1} parent=1 // pred_check_branch
      %635 = sbr.rel (0) target = $region41
    $region40: #{tpu_custom_call.1} parent=1 // pred_region
      %636 = dma.done [#allocation4], 256
    $region41: #{tpu_custom_call.1} parent=1 // pred_fallthru
      _
    %637 = vsyncpa [#allocation3], 1
    %638 = vsyncpa [#allocation6], 1
    %639 = vsyncpa [#allocation4], 1

</llo_original>
